<compile_context>
chip_gen: v7x
topology: tpu7x:2x2x1
jax: 0.10.0
libtpu: 0.0.40
codegen_flags: <defaults>
</compile_context>

<pallas_src>
import functools
import math

import jax
import jax.numpy as jnp
from jax.experimental import pallas as pl
from jax.experimental.pallas import tpu as pltpu


_NEG_BIG = -1.0e30  # value for masked (out-of-vocab) lanes; removes them from softmax


def _copygen_kernel(x_ref, w_ref, b_ref, out_ref, m_ref, s_ref, lse_ref, *, v_total):
    # x_ref  : (TM, H)   row tile of flattened hidden states (native dtype)
    # w_ref  : (H, TV)   vocab tile of the transposed linear weight
    # b_ref  : (1, TV)   vocab tile of the bias (f32)
    # out_ref: (TM, TV)  log-prob tile (written in pass 1 only)
    # m_ref  : (TM, 1)   running max          (f32 VMEM scratch)
    # s_ref  : (TM, 1)   running sum of exp   (f32 VMEM scratch)
    # lse_ref: (TM, 1)   final logsumexp      (f32 VMEM scratch)
    p = pl.program_id(1)            # 0 = logsumexp pass, 1 = write pass
    j = pl.program_id(2)            # vocab tile index
    nj = pl.num_programs(2)
    tv = w_ref.shape[1]

    @pl.when(jnp.logical_and(p == 0, j == 0))
    def _init():
        m_ref[...] = jnp.full_like(m_ref, -jnp.inf)
        s_ref[...] = jnp.zeros_like(s_ref)

    # logits tile for this vocab slab; f32 accumulation on the MXU
    logits = jnp.dot(x_ref[...], w_ref[...],
                     preferred_element_type=jnp.float32) + b_ref[...]

    # mask the ragged last vocab tile in-kernel (no wrapper-side weight/bias pad)
    if v_total % tv != 0:
        col = j * tv + jax.lax.broadcasted_iota(jnp.int32, logits.shape, 1)
        logits = jnp.where(col < v_total, logits, _NEG_BIG)

    @pl.when(p == 0)
    def _pass0():
        # online (flash-style) logsumexp update
        m_prev = m_ref[...]
        m_new = jnp.maximum(m_prev, jnp.max(logits, axis=-1, keepdims=True))
        s_ref[...] = (s_ref[...] * jnp.exp(m_prev - m_new)
                      + jnp.sum(jnp.exp(logits - m_new), axis=-1, keepdims=True))
        m_ref[...] = m_new

        @pl.when(j == nj - 1)
        def _finish_lse():
            lse_ref[...] = m_ref[...] + jnp.log(s_ref[...])

    @pl.when(p == 1)
    def _pass1():
        out_ref[...] = (logits - lse_ref[...]).astype(out_ref.dtype)


def _round_up(x, m):
    return (x + m - 1) // m * m


def _nbytes(shape, dtype):
    return int(jnp.dtype(dtype).itemsize) * int(math.prod(shape))


def copy_generator_forward(hidden, weight_t, bias, *, tm=None, tv=None):
    """hidden: [tlen, batch, H]; weight_t: [H, V] (= nn.Linear.weight.T);
    bias: [V].  Returns log-probs [tlen, batch, V] in hidden.dtype."""
    tlen, batch, H = hidden.shape
    V = weight_t.shape[1]
    n_rows = tlen * batch
    out_dtype = hidden.dtype

    # TODO(synk): nn.Dropout is identity at eval time; training-mode dropout
    # (stateful RNG mask) is not implemented here.

    # --- per-generation default tile sizes -----------------------------------
    if tm is None or tv is None:
        try:
            kind = jax.devices()[0].device_kind.lower()
        except Exception:
            kind = ""
        if tm is None:
            # v6e needs ~670 flop/weight-byte to be MXU-bound -> larger row
            # tile; v5e (~240) and v7x (~310 per TC) are fine at 512.
            tm = 1024 if "v6" in kind else 512
        if tv is None:
            tv = 1024

    tm = min(_round_up(tm, 8), _round_up(n_rows, 8))         # sublane multiple
    tv = min(_round_up(tv, 128), _round_up(V, 128))          # lane multiple

    ni = pl.cdiv(n_rows, tm)
    nj = pl.cdiv(V, tv)
    grid = (ni, 2, nj)        # rows x {logsumexp pass, write pass} x vocab tiles

    x = hidden.reshape(n_rows, H)
    b = bias.astype(jnp.float32).reshape(1, V)

    # --- VMEM budget: O(tm*tv), independent of |tgt_dict| --------------------
    vmem_needed = (2 * _nbytes((tm, H), x.dtype)             # x tile (dbl buf)
                   + 2 * _nbytes((H, tv), weight_t.dtype)    # weight tile
                   + 2 * _nbytes((1, tv), jnp.float32)       # bias tile
                   + 2 * _nbytes((tm, tv), out_dtype)        # output tile
                   + 3 * _nbytes((tm, 1), jnp.float32))      # m / s / lse scratch
    try:
        phys_vmem = int(pltpu.get_tpu_info().vmem_capacity_bytes)
    except Exception:
        phys_vmem = 64 * 1024 * 1024                         # conservative (v7x)
    hard_cap = max(int(0.85 * phys_vmem), 16 * 1024 * 1024)  # never exceed physical
    vmem_limit = int(min(max(2 * vmem_needed, 32 * 1024 * 1024), hard_cap))

    w_itemsize = int(jnp.dtype(weight_t.dtype).itemsize)
    cost = pl.CostEstimate(
        flops=4 * n_rows * H * V,                            # matmul done in both passes
        transcendentals=n_rows * V,
        bytes_accessed=(_nbytes((n_rows, H), x.dtype)
                        + 2 * ni * H * V * w_itemsize        # weight re-streamed per row tile & pass
                        + 2 * ni * V * 4                     # bias re-streamed
                        + _nbytes((n_rows, V), out_dtype)))

    kernel = functools.partial(_copygen_kernel, v_total=V)

    out = pl.pallas_call(
        kernel,
        out_shape=jax.ShapeDtypeStruct((n_rows, V), out_dtype),
        grid_spec=pltpu.PrefetchScalarGridSpec(
            num_scalar_prefetch=0,
            grid=grid,
            in_specs=[
                # hidden rows: resident across the whole (pass, vocab) sweep
                pl.BlockSpec((tm, H), lambda i, p, j: (i, 0)),
                # weight: streamed over vocab tiles (re-streamed in pass 1).
                # TODO(synk): add pipeline_mode=pl.Buffered(3) here if profiling
                # shows the weight DMA is still exposed after the tm/tv increase.
                pl.BlockSpec((H, tv), lambda i, p, j: (0, j)),
                pl.BlockSpec((1, tv), lambda i, p, j: (0, j)),
            ],
            # (i, j*p): pinned to (i, 0) during pass 0 so no uninitialized block
            # is ever written back; lane-dense (tm, tv) blocks during pass 1.
            out_specs=pl.BlockSpec((tm, tv), lambda i, p, j: (i, j * p)),
            scratch_shapes=[
                pltpu.VMEM((tm, 1), jnp.float32),            # running max
                pltpu.VMEM((tm, 1), jnp.float32),            # running sum
                pltpu.VMEM((tm, 1), jnp.float32),            # logsumexp
            ],
        ),
        compiler_params=pltpu.CompilerParams(
            dimension_semantics=("parallel", "arbitrary", "arbitrary"),
            vmem_limit_bytes=vmem_limit),
        cost_estimate=cost,
    )(x, weight_t, b)

    return out.reshape(tlen, batch, V)


def _reference(hidden, weight_t, bias):
    tlen, batch, H = hidden.shape
    x = hidden.reshape(tlen * batch, H).astype(jnp.float32)
    logits = x @ weight_t.astype(jnp.float32) + bias.astype(jnp.float32)[None, :]
    lp = jax.nn.log_softmax(logits, axis=-1)
    return lp.reshape(tlen, batch, -1)


if __name__ == "__main__":
    # small shapes consistent with the module's forward
    tlen, batch = 8, 2          # decoder length, batch size
    hidden_size = 32
    context_size = 32
    tgt_vocab = 64              # len(tgt_dict)
    src_len = 8

    key = jax.random.PRNGKey(0)
    k_h, k_dec, k_cc, k_attn, k_w, k_b = jax.random.split(key, 6)

    # forward-pass inputs (only `hidden` matters due to the early return)
    hidden = jax.random.normal(k_h, (tlen, batch, hidden_size), jnp.float32)
    dec_rnn_output = jax.random.normal(k_dec, (tlen, batch, hidden_size), jnp.float32)
    concat_c = jax.random.normal(k_cc, (tlen, batch, hidden_size + context_size), jnp.float32)
    attn = jax.nn.softmax(
        jax.random.normal(k_attn, (tlen, batch, src_len), jnp.float32), axis=-1)
    copy_to_ext = jnp.zeros((src_len, batch), jnp.int32)
    copy_to_tgt = jnp.zeros((src_len, batch), jnp.int32)

    # deterministic parameter init (shapes from nn.Linear(hidden_size, len(tgt_dict)))
    bound = 1.0 / (hidden_size ** 0.5)
    weight = jax.random.uniform(k_w, (tgt_vocab, hidden_size), jnp.float32,
                                minval=-bound, maxval=bound)   # nn.Linear.weight
    bias = jax.random.uniform(k_b, (tgt_vocab,), jnp.float32,
                              minval=-bound, maxval=bound)
    weight_t = weight.T                                         # [H, V] for the kernel

    # f32 path (matches caller dtype -> f32 output), checked tightly vs reference
    out = copy_generator_forward(hidden, weight_t, bias)
    out = jax.block_until_ready(out)
    ref = _reference(hidden, weight_t, bias)
    assert out.shape == (tlen, batch, tgt_vocab)
    assert jnp.allclose(out, ref, atol=1e-5, rtol=1e-5), "f32 mismatch vs reference"

    # bf16 path (native-dtype operands, f32 MXU accumulation, bf16 writeback)
    out_bf = copy_generator_forward(hidden.astype(jnp.bfloat16),
                                    weight_t.astype(jnp.bfloat16),
                                    bias)
    out_bf = jax.block_until_ready(out_bf)
    assert out_bf.dtype == jnp.bfloat16
    assert jnp.allclose(out_bf.astype(jnp.float32), ref, atol=0.15), \
        "bf16 mismatch vs reference"

    print("KERNEL_OK")
</pallas_src>

<mosaic_0001>
module attributes {stable_mosaic.version = 11 : i64} {
  func.func @_copygen_kernel(%arg0: i32, %arg1: i32, %arg2: i32, %arg3: memref<16x32xf32, #tpu.memory_space<vmem>>, %arg4: memref<32x128xf32, #tpu.memory_space<vmem>>, %arg5: memref<1x128xf32, #tpu.memory_space<vmem>>, %arg6: memref<16x128xf32, #tpu.memory_space<vmem>>, %arg7: memref<16x1xf32, #tpu.memory_space<vmem>>, %arg8: memref<16x1xf32, #tpu.memory_space<vmem>>, %arg9: memref<16x1xf32, #tpu.memory_space<vmem>>) attributes {dimension_semantics = [#tpu.dimension_semantics<parallel>, #tpu.dimension_semantics<arbitrary>, #tpu.dimension_semantics<arbitrary>], iteration_bounds = array<i64: 1, 2, 1>, scalar_prefetch = 0 : i64, scratch_operands = 3 : i64, tpu.core_type = #tpu.core_type<tc>, window_params = [{transform_indices = @transform_0, window_bounds = array<i64: 16, 32>}, {transform_indices = @transform_1, window_bounds = array<i64: 32, 128>}, {transform_indices = @transform_2, window_bounds = array<i64: 1, 128>}, {transform_indices = @transform_3, window_bounds = array<i64: 16, 128>}]} {
    %c0_i32 = arith.constant 0 : i32
    %0 = arith.cmpi eq, %arg1, %c0_i32 : i32
    %c0_i32_0 = arith.constant 0 : i32
    %1 = arith.cmpi eq, %arg2, %c0_i32_0 : i32
    %2 = arith.andi %0, %1 : i1
    %3 = arith.extui %2 : i1 to i32
    %c0_i32_1 = arith.constant 0 : i32
    %4 = arith.cmpi ne, %3, %c0_i32_1 : i32
    scf.if %4 {
      %cst_11 = arith.constant 0xFF800000 : f32
      %25 = vector.broadcast %cst_11 : f32 to vector<16x1xf32>
      %c0_12 = arith.constant 0 : index
      %c0_13 = arith.constant 0 : index
      %26 = vector.load %arg7[%c0_12, %c0_13] : memref<16x1xf32, #tpu.memory_space<vmem>>, vector<16x1xf32>
      tpu.vector_store %arg7[%c0_12, %c0_13], %25 {strides = array<i32>} : memref<16x1xf32, #tpu.memory_space<vmem>>, vector<16x1xf32>,
      %cst_14 = arith.constant 0.000000e+00 : f32
      %27 = vector.broadcast %cst_14 : f32 to vector<16x1xf32>
      %c0_15 = arith.constant 0 : index
      %c0_16 = arith.constant 0 : index
      %28 = vector.load %arg8[%c0_15, %c0_16] : memref<16x1xf32, #tpu.memory_space<vmem>>, vector<16x1xf32>
      tpu.vector_store %arg8[%c0_15, %c0_16], %27 {strides = array<i32>} : memref<16x1xf32, #tpu.memory_space<vmem>>, vector<16x1xf32>,
    } else {
    }
    %c0 = arith.constant 0 : index
    %c0_2 = arith.constant 0 : index
    %5 = vector.load %arg3[%c0, %c0_2] : memref<16x32xf32, #tpu.memory_space<vmem>>, vector<16x32xf32>
    %c0_3 = arith.constant 0 : index
    %c0_4 = arith.constant 0 : index
    %6 = vector.load %arg4[%c0_3, %c0_4] : memref<32x128xf32, #tpu.memory_space<vmem>>, vector<32x128xf32>
    %cst = arith.constant dense<0.000000e+00> : vector<16x128xf32>
    %7 = tpu.matmul %5, %6, %cst {dimension_numbers = #tpu.dot_dimension_numbers<[1], [0], [0], [1], [0, 0, 1, 1], [], []>} : vector<16x32xf32>, vector<32x128xf32>, vector<16x128xf32> -> vector<16x128xf32>
    %c0_5 = arith.constant 0 : index
    %c0_6 = arith.constant 0 : index
    %8 = vector.load %arg5[%c0_5, %c0_6] : memref<1x128xf32, #tpu.memory_space<vmem>>, vector<1x128xf32>
    %9 = vector.broadcast %8 : vector<1x128xf32> to vector<16x128xf32>
    %10 = arith.addf %7, %9 : vector<16x128xf32>
    %c128_i32 = arith.constant 128 : i32
    %11 = arith.muli %arg2, %c128_i32 : i32
    %12 = tpu.iota {dimensions = array<i32: 1>} : vector<16x128xi32>
    %13 = vector.broadcast %11 : i32 to vector<16x128xi32>
    %14 = arith.addi %13, %12 : vector<16x128xi32>
    %c64_i32 = arith.constant 64 : i32
    %15 = vector.broadcast %c64_i32 : i32 to vector<16x128xi32>
    %16 = arith.cmpi slt, %14, %15 : vector<16x128xi32>
    %cst_7 = arith.constant -1.000000e+30 : f32
    %17 = vector.broadcast %cst_7 : f32 to vector<16x128xf32>
    %18 = arith.select %16, %10, %17 : vector<16x128xi1>, vector<16x128xf32>
    %c0_i32_8 = arith.constant 0 : i32
    %19 = arith.cmpi eq, %arg1, %c0_i32_8 : i32
    %20 = arith.extui %19 : i1 to i32
    %c0_i32_9 = arith.constant 0 : i32
    %21 = arith.cmpi ne, %20, %c0_i32_9 : i32
    scf.if %21 {
      %c0_11 = arith.constant 0 : index
      %c0_12 = arith.constant 0 : index
      %25 = vector.load %arg7[%c0_11, %c0_12] : memref<16x1xf32, #tpu.memory_space<vmem>>, vector<16x1xf32>
      %cst_13 = arith.constant dense<0xFF800000> : vector<16xf32>
      %26 = vector.multi_reduction <maximumf>, %18, %cst_13 [1] : vector<16x128xf32> to vector<16xf32>
      %27 = vector.shape_cast %26 : vector<16xf32> to vector<16x1xf32>
      %28 = arith.maximumf %25, %27 : vector<16x1xf32>
      %c0_14 = arith.constant 0 : index
      %c0_15 = arith.constant 0 : index
      %29 = vector.load %arg8[%c0_14, %c0_15] : memref<16x1xf32, #tpu.memory_space<vmem>>, vector<16x1xf32>
      %30 = arith.subf %25, %28 : vector<16x1xf32>
      %31 = math.exp %30 : vector<16x1xf32>
      %32 = arith.mulf %29, %31 : vector<16x1xf32>
      %33 = vector.broadcast %28 : vector<16x1xf32> to vector<16x128xf32>
      %34 = arith.subf %18, %33 : vector<16x128xf32>
      %35 = math.exp %34 : vector<16x128xf32>
      %cst_16 = arith.constant dense<0.000000e+00> : vector<16xf32>
      %36 = vector.multi_reduction <add>, %35, %cst_16 [1] : vector<16x128xf32> to vector<16xf32>
      %37 = vector.shape_cast %36 : vector<16xf32> to vector<16x1xf32>
      %38 = arith.addf %32, %37 : vector<16x1xf32>
      %c0_17 = arith.constant 0 : index
      %c0_18 = arith.constant 0 : index
      %39 = vector.load %arg8[%c0_17, %c0_18] : memref<16x1xf32, #tpu.memory_space<vmem>>, vector<16x1xf32>
      tpu.vector_store %arg8[%c0_17, %c0_18], %38 {strides = array<i32>} : memref<16x1xf32, #tpu.memory_space<vmem>>, vector<16x1xf32>,
      %c0_19 = arith.constant 0 : index
      %c0_20 = arith.constant 0 : index
      %40 = vector.load %arg7[%c0_19, %c0_20] : memref<16x1xf32, #tpu.memory_space<vmem>>, vector<16x1xf32>
      tpu.vector_store %arg7[%c0_19, %c0_20], %28 {strides = array<i32>} : memref<16x1xf32, #tpu.memory_space<vmem>>, vector<16x1xf32>,
      %c0_i32_21 = arith.constant 0 : i32
      %41 = arith.cmpi eq, %arg2, %c0_i32_21 : i32
      %42 = arith.extui %41 : i1 to i32
      %c0_i32_22 = arith.constant 0 : i32
      %43 = arith.cmpi ne, %42, %c0_i32_22 : i32
      scf.if %43 {
        %c0_23 = arith.constant 0 : index
        %c0_24 = arith.constant 0 : index
        %44 = vector.load %arg7[%c0_23, %c0_24] : memref<16x1xf32, #tpu.memory_space<vmem>>, vector<16x1xf32>
        %c0_25 = arith.constant 0 : index
        %c0_26 = arith.constant 0 : index
        %45 = vector.load %arg8[%c0_25, %c0_26] : memref<16x1xf32, #tpu.memory_space<vmem>>, vector<16x1xf32>
        %46 = math.log %45 : vector<16x1xf32>
        %47 = arith.addf %44, %46 : vector<16x1xf32>
        %c0_27 = arith.constant 0 : index
        %c0_28 = arith.constant 0 : index
        %48 = vector.load %arg9[%c0_27, %c0_28] : memref<16x1xf32, #tpu.memory_space<vmem>>, vector<16x1xf32>
        tpu.vector_store %arg9[%c0_27, %c0_28], %47 {strides = array<i32>} : memref<16x1xf32, #tpu.memory_space<vmem>>, vector<16x1xf32>,
      } else {
      }
    } else {
    }
    %c1_i32 = arith.constant 1 : i32
    %22 = arith.cmpi eq, %arg1, %c1_i32 : i32
    %23 = arith.extui %22 : i1 to i32
    %c0_i32_10 = arith.constant 0 : i32
    %24 = arith.cmpi ne, %23, %c0_i32_10 : i32
    scf.if %24 {
      %c0_11 = arith.constant 0 : index
      %c0_12 = arith.constant 0 : index
      %25 = vector.load %arg9[%c0_11, %c0_12] : memref<16x1xf32, #tpu.memory_space<vmem>>, vector<16x1xf32>
      %26 = vector.broadcast %25 : vector<16x1xf32> to vector<16x128xf32>
      %27 = arith.subf %18, %26 : vector<16x128xf32>
      %c0_13 = arith.constant 0 : index
      %c0_14 = arith.constant 0 : index
      %28 = vector.load %arg6[%c0_13, %c0_14] : memref<16x128xf32, #tpu.memory_space<vmem>>, vector<16x128xf32>
      tpu.vector_store %arg6[%c0_13, %c0_14], %27 {strides = array<i32>} : memref<16x128xf32, #tpu.memory_space<vmem>>, vector<16x128xf32>,
    } else {
    }
    return
  }
  func.func @transform_0(%arg0: i32, %arg1: i32, %arg2: i32) -> (i32, i32) {
    %c0_i32 = arith.constant 0 : i32
    %c0_i32_0 = arith.constant 0 : i32
    return %arg0, %c0_i32 : i32, i32
  }
  func.func @transform_1(%arg0: i32, %arg1: i32, %arg2: i32) -> (i32, i32) {
    %c0_i32 = arith.constant 0 : i32
    %c0_i32_0 = arith.constant 0 : i32
    return %c0_i32, %arg2 : i32, i32
  }
  func.func @transform_2(%arg0: i32, %arg1: i32, %arg2: i32) -> (i32, i32) {
    %c0_i32 = arith.constant 0 : i32
    %c0_i32_0 = arith.constant 0 : i32
    return %c0_i32, %arg2 : i32, i32
  }
  func.func @transform_3(%arg0: i32, %arg1: i32, %arg2: i32) -> (i32, i32) {
    %0 = arith.muli %arg2, %arg1 : i32
    %c0_i32 = arith.constant 0 : i32
    return %arg0, %0 : i32, i32
  }
}

</mosaic_0001>

<llo_original>
// kernel: tpu_custom_call.1
$region0: #{tpu_custom_call.1}
  #allocation0 [shape = 'u32[]', space=smem, size = 0x4, offset = 0x4, fixed_abs, tag = 'smem constant byte address 0x4 - core index']
  #allocation1 [shape = 'u32[144,128]{1,0:T(1,128)}', space=vmem, size = 0x12000, scoped, tag = 'internal scratch']
  #allocation2 [shape = 'f32[16,1]{1,0:T(8,128)}', space=vmem, size = 0x2000, scoped, tag = 'scratch operand']
  #allocation3 [shape = 'f32[16,1]{1,0:T(8,128)}', space=vmem, size = 0x2000, scoped, tag = 'scratch operand']
  #allocation4 [shape = 'f32[16,1]{1,0:T(8,128)}', space=vmem, size = 0x2000, scoped, tag = 'scratch operand']
  %s0 = inlined_call_operand.hbm [shape: f32[16,32], index: 0, kind: input, shape index: {}]
  %s1 = inlined_call_operand.hbm [shape: f32[32,64], index: 1, kind: input, shape index: {}]
  %s2 = inlined_call_operand.vmem [shape: f32[1,64], index: 2, kind: input, shape index: {}]
  %s3 = inlined_call_operand.hbm [shape: f32[16,64], index: 3, kind: output, shape index: {}]
  %s4 = sld [smem:[#allocation0]]
  $region69: #{tpu_custom_call.1} parent=0
    _
  %s6 = ssub.s32 1, %s4
  %s7 = scalar_select 0, %s6, %s4
  $region1: #{tpu_custom_call.1} parent=0
    #allocation5 [shape = 'u8[8192]{0}', space=vmem, size = 0x2000, scoped, tag = 'input window, operand 0, single buffered']
    #allocation6 [shape = 's32[2]{0}', space=sflag, size = 0x8, scoped, tag = 'scoped memory for tpu_custom_call.1']
    #allocation7 [shape = 's32[2]{0}', space=sflag, size = 0x8, scoped, tag = 'scoped memory for tpu_custom_call.1']
    #allocation8 [shape = 'u8[16384]{0}', space=vmem, size = 0x4000, scoped, tag = 'input window, operand 1, single buffered']
    #allocation9 [shape = 's32[1]{0}', space=sflag, size = 0x4, scoped, tag = 'scoped memory for tpu_custom_call.1']
    #allocation10 [shape = 'u8[16384]{0}', space=vmem, size = 0x4000, scoped, tag = 'output window, operand 0']
    %8 = vsyncpa [#allocation6], 0
    %9 = vsyncpa [#allocation9], 0
    %10 = vsyncpa [#allocation7], 0
    %s11 = scalar_lea.sflag [#allocation7], 1
    %12 = vsyncpa %s11, 0
    loop: start=0, step=1, limit=4
    $region2: #{tpu_custom_call.1} parent=1 // loop_pre_header
      _
    $region3: #{tpu_custom_call.1} parent=1 // loop_header
      %s14 = sphi 0, %s18
      %p15 = scmp.ge.s32.totalorder %s14, 4
      %s21 = sphi 0, %s40
      %s22 = sphi 0, %s36
      %s23 = sphi 0, %s32
      %s24 = sphi 0, %s21
      %s25 = sphi 0, %s22
      %s26 = sphi 0, %s23
      %s27 = sphi 0, %s24
      %s28 = sphi 0, %s25
      %s29 = sphi 0, %s26
      %s43 = sphi 0, %s45
      %s46 = sphi 0, %s43
      %s47 = sphi 0, %s46
      %s63 = sphi 0, %s47
      %s69 = sphi 0, %s71
      %s72 = sphi 0, %s69
      %s73 = sphi 0, %s72
      %s89 = sphi 0, %s73
      %s95 = sphi 0, %s97
      %s98 = sphi 0, %s95
      %s99 = sphi 0, %s98
      %s115 = sphi 0, %s99
      %s125 = sphi 0, %s127
      %s128 = sphi 0, %s125
      %s129 = sphi 0, %s128
      %s145 = sphi 0, %s129
    $region4: #{tpu_custom_call.1} parent=1 // loop_header_branch
      %17 = sbr.rel (%p15) target = $region8
    $region5: #{tpu_custom_call.1} parent=1 // loop_body
      %s19 = ssub.s32 %s14, 1
      %s20 = ssub.s32 %s14, 2
      %s30 = sadd.s32 1, %s23
      %p31 = scmp.ge.s32.totalorder %s30, 1
      %s32 = scalar_select %p31, 0, %s30
      %s33 = sadd.s32 1, %s22
      %s34 = scalar_select %p31, %s33, %s22
      %p35 = scmp.ge.s32.totalorder %s34, 2
      %s36 = scalar_select %p35, 0, %s34
      %s37 = sadd.s32 1, %s21
      %s38 = scalar_select %p35, %s37, %s21
      %p39 = scmp.ge.s32.totalorder %s38, 1
      %s40 = scalar_select %p39, 0, %s38
      %s41 = ssub.s32 %s21, %s40
      %p42 = scmp.eq.s32.totalorder %s41, 0
      %s44 = sadd.s32 %s43, 1
      %s45 = scalar_select %p42, %s43, %s44
      %p48 = pneg %p42
      %p49 = scmp.eq.s32.totalorder %s14, 1
      %p50 = por %p48, %p49
      %p51 = scmp.ne.s32.totalorder %s43, %s46
      %p52 = scmp.eq.s32.totalorder %s14, 0
      %p53 = por %p51, %p52
      %p54 = scmp.ne.s32.totalorder %s43, %s46
      %p55 = scmp.eq.s32.totalorder %s19, 1
      %p56 = por %p54, %p55
      %p57 = scmp.ne.s32.totalorder %s46, %s47
      %p58 = scmp.eq.s32.totalorder %s19, 0
      %p59 = por %p57, %p58
      %p60 = scmp.ne.s32.totalorder %s46, %s47
      %p61 = scmp.eq.s32.totalorder %s20, 1
      %p62 = por %p60, %p61
      %p64 = scmp.ne.s32.totalorder %s47, %s63
      %p65 = scmp.eq.s32.totalorder %s20, 0
      %p66 = por %p64, %p65
      %s67 = ssub.s32 %s23, %s32
      %p68 = scmp.eq.s32.totalorder %s67, 0
      %s70 = sadd.s32 %s69, 1
      %s71 = scalar_select %p68, %s69, %s70
      %p74 = pneg %p68
      %p75 = scmp.eq.s32.totalorder %s14, 1
      %p76 = por %p74, %p75
      %p77 = scmp.ne.s32.totalorder %s69, %s72
      %p78 = scmp.eq.s32.totalorder %s14, 0
      %p79 = por %p77, %p78
      %p80 = scmp.ne.s32.totalorder %s69, %s72
      %p81 = scmp.eq.s32.totalorder %s19, 1
      %p82 = por %p80, %p81
      %p83 = scmp.ne.s32.totalorder %s72, %s73
      %p84 = scmp.eq.s32.totalorder %s19, 0
      %p85 = por %p83, %p84
      %p86 = scmp.ne.s32.totalorder %s72, %s73
      %p87 = scmp.eq.s32.totalorder %s20, 1
      %p88 = por %p86, %p87
      %p90 = scmp.ne.s32.totalorder %s73, %s89
      %p91 = scmp.eq.s32.totalorder %s20, 0
      %p92 = por %p90, %p91
      %s93 = ssub.s32 %s23, %s32
      %p94 = scmp.eq.s32.totalorder %s93, 0
      %s96 = sadd.s32 %s95, 1
      %s97 = scalar_select %p94, %s95, %s96
      %p100 = pneg %p94
      %p101 = scmp.eq.s32.totalorder %s14, 1
      %p102 = por %p100, %p101
      %p103 = scmp.ne.s32.totalorder %s95, %s98
      %p104 = scmp.eq.s32.totalorder %s14, 0
      %p105 = por %p103, %p104
      %p106 = scmp.ne.s32.totalorder %s95, %s98
      %p107 = scmp.eq.s32.totalorder %s19, 1
      %p108 = por %p106, %p107
      %p109 = scmp.ne.s32.totalorder %s98, %s99
      %p110 = scmp.eq.s32.totalorder %s19, 0
      %p111 = por %p109, %p110
      %p112 = scmp.ne.s32.totalorder %s98, %s99
      %p113 = scmp.eq.s32.totalorder %s20, 1
      %p114 = por %p112, %p113
      %p116 = scmp.ne.s32.totalorder %s99, %s115
      %p117 = scmp.eq.s32.totalorder %s20, 0
      %p118 = por %p116, %p117
      %s119 = smul.u32 %s23, %s22
      %s120 = smul.u32 %s32, %s36
      %s121 = ssub.s32 %s21, %s40
      %s122 = ssub.s32 %s119, %s120
      %s123 = sor.u32 %s121, %s122
      %p124 = scmp.eq.s32.totalorder %s123, 0
      %s126 = sadd.s32 %s125, 1
      %s127 = scalar_select %p124, %s125, %s126
      %p130 = pneg %p124
      %p131 = scmp.eq.s32.totalorder %s14, 1
      %p132 = por %p130, %p131
      %p133 = scmp.ne.s32.totalorder %s125, %s128
      %p134 = scmp.eq.s32.totalorder %s14, 0
      %p135 = por %p133, %p134
      %p136 = scmp.ne.s32.totalorder %s125, %s128
      %p137 = scmp.eq.s32.totalorder %s19, 1
      %p138 = por %p136, %p137
      %p139 = scmp.ne.s32.totalorder %s128, %s129
      %p140 = scmp.eq.s32.totalorder %s19, 0
      %p141 = por %p139, %p140
      %p142 = scmp.ne.s32.totalorder %s128, %s129
      %p143 = scmp.eq.s32.totalorder %s20, 1
      %p144 = por %p142, %p143
      %p146 = scmp.ne.s32.totalorder %s129, %s145
      %p147 = scmp.eq.s32.totalorder %s20, 0
      %p148 = por %p146, %p147
      %p149 = scmp.le.s32.totalorder 1, %s14
      %p150 = scmp.lt.s32.totalorder %s14, 3
      %p151 = pnand %p149, %p150
      %p152 = pneg %p151
      // Predicated region
      $region9: #{tpu_custom_call.1} parent=5 // pred_check
        _
      $region10: #{tpu_custom_call.1} parent=5 // pred_check_branch
        %154 = sbr.rel (%p151) target = $region12
      $region11: #{tpu_custom_call.1} parent=5 // pred_region
        %s155 = ssub.s32 %s14, 1
        // Predicated region
        $region13: #{tpu_custom_call.1} parent=11 // pred_check
          %p156 = pneg %p59
        $region14: #{tpu_custom_call.1} parent=11 // pred_check_branch
          %158 = sbr.rel (%p156) target = $region16
        $region15: #{tpu_custom_call.1} parent=11 // pred_region
          %s159 = smul.u32 2, %s24
          %s161 = ssub.s32 256, 256
          %162 = vsyncadd [#allocation6], %s161
          %s163 = smul.addr %s159, 128
          %s164 = scalar_lea.hbm %s0, %s163
          %s165 = sshll.u32 [#allocation5], 4
          %s166 = int_to_ptr.vmem [resolvable:$true] %s165
          %171 = dma.hbm_to_vmem [thread:$0]  %s164, 256, %s166, [#allocation6], 128, 128, 8
        $region16: #{tpu_custom_call.1} parent=11 // pred_fallthru
          _
        // Predicated region
        $region17: #{tpu_custom_call.1} parent=11 // pred_check
          %p172 = pneg %p85
        $region18: #{tpu_custom_call.1} parent=11 // pred_check_branch
          %174 = sbr.rel (%p172) target = $region20
        $region19: #{tpu_custom_call.1} parent=11 // pred_region
          %s176 = ssub.s32 512, 512
          %177 = vsyncadd [#allocation9], %s176
          %s178 = smul.addr %s26, 128
          %s179 = scalar_lea.hbm %s1, %s178
          %s180 = sshll.u32 [#allocation8], 4
          %s181 = int_to_ptr.vmem [resolvable:$true] %s180
          %186 = dma.hbm_to_vmem [thread:$0]  %s179, 512, %s181, [#allocation9], 128, 128, 8
        $region20: #{tpu_custom_call.1} parent=11 // pred_fallthru
          _
        // Predicated region
        $region21: #{tpu_custom_call.1} parent=11 // pred_check
          %p187 = pneg %p111
        $region22: #{tpu_custom_call.1} parent=11 // pred_check_branch
          %189 = sbr.rel (%p187) target = $region24
        $region23: #{tpu_custom_call.1} parent=11 // pred_region
          %p190 = scmp.lt.s32.totalorder %s26, 0
          %s191 = scalar_select %p190, %s26, 0
          %s192 = scalar_lea.vmem %s2, %s191
        $region24: #{tpu_custom_call.1} parent=11 // pred_fallthru
          _
      $region12: #{tpu_custom_call.1} parent=5 // pred_fallthru
        _
      %p193 = scmp.lt.s32.totalorder %s14, 2
      // Predicated region
      $region25: #{tpu_custom_call.1} parent=5 // pred_check
        %p194 = pneg %p193
      $region26: #{tpu_custom_call.1} parent=5 // pred_check_branch
        %196 = sbr.rel (%p194) target = $region28
      $region27: #{tpu_custom_call.1} parent=5 // pred_region
        _
      $region28: #{tpu_custom_call.1} parent=5 // pred_fallthru
        _
      %p197 = scmp.le.s32.totalorder 1, %s14
      %p198 = scmp.lt.s32.totalorder %s14, 3
      %p199 = pnand %p197, %p198
      %p200 = pneg %p199
      // Predicated region
      $region29: #{tpu_custom_call.1} parent=5 // pred_check
        _
      $region30: #{tpu_custom_call.1} parent=5 // pred_check_branch
        %202 = sbr.rel (%p199) target = $region32
      $region31: #{tpu_custom_call.1} parent=5 // pred_region
        %s203 = ssub.s32 %s14, 1
        // Predicated region
        $region33: #{tpu_custom_call.1} parent=31 // pred_check
          %p204 = pneg %p59
        $region34: #{tpu_custom_call.1} parent=31 // pred_check_branch
          %206 = sbr.rel (%p204) target = $region36
        $region35: #{tpu_custom_call.1} parent=31 // pred_region
          %207 = dma.done [#allocation6], 256
        $region36: #{tpu_custom_call.1} parent=31 // pred_fallthru
          _
        // Predicated region
        $region37: #{tpu_custom_call.1} parent=31 // pred_check
          %p208 = pneg %p85
        $region38: #{tpu_custom_call.1} parent=31 // pred_check_branch
          %210 = sbr.rel (%p208) target = $region40
        $region39: #{tpu_custom_call.1} parent=31 // pred_region
          %211 = dma.done [#allocation9], 512
        $region40: #{tpu_custom_call.1} parent=31 // pred_fallthru
          _
        %p212 = pneg %p59
        %p213 = pneg %p56
        %p214 = pneg %p85
        %p215 = pneg %p82
        %p216 = scmp.lt.s32.totalorder %s26, 0
        %s217 = scalar_select %p216, %s26, 0
        %s218 = scalar_lea.vmem %s2, %s217
        %p219 = pneg %p111
        %p220 = pneg %p108
        %p221 = pneg %p141
        %p222 = pneg %p138
        %s223 = sand.u32 %s128, 1
        %s224 = scalar_lea.sflag [#allocation7], %s223
        %s225 = sand.u32 %s128, 1
        %s226 = smul.addr %s225, 16
        %s227 = scalar_lea.vmem [#allocation10], %s226
        %s228 = smul.u32 2, %s24
        %p229 = scmp.lt.s32.totalorder %s26, 0
        %s230 = scalar_select %p229, %s26, 0
        %s231 = scalar_lea.vmem %s2, %s230
        %s232 = smul.u32 %s26, %s25
        %s233 = smul.u32 2, %s24
        %p234 = scmp.eq.s32.totalorder %s25, 0
        %p235 = scmp.eq.s32.totalorder %s26, 0
        %p236 = pnand %p234, %p235
        %p237 = pneg %p236
        // Predicated region
        $region41: #{tpu_custom_call.1} parent=31 // pred_check
          _
        $region42: #{tpu_custom_call.1} parent=31 // pred_check_branch
          %239 = sbr.rel (%p236) target = $region44
        $region43: #{tpu_custom_call.1} parent=31 // pred_region
          %vm240 = vcmask 7168
          %241 = vst.msk [vmem:[#allocation2] sm:$0xff] %vm240, -inf
          %242 = vst.msk [vmem:[#allocation2 + $0x8] sm:$0xff] %vm240, -inf
          %243 = vst.msk [vmem:[#allocation3] sm:$0xff] %vm240, 0.0
          %244 = vst.msk [vmem:[#allocation3 + $0x8] sm:$0xff] %vm240, 0.0
        $region44: #{tpu_custom_call.1} parent=31 // pred_fallthru
          _
        %v245 = vld [vmem:[#allocation5] sm:$0xff]
        %v246 = vld [vmem:[#allocation5 + $0x8] sm:$0xff]
        %v247 = vld [vmem:[#allocation8] sm:$0xff]
        %v248 = vld [vmem:[#allocation8 + $0x8] sm:$0xff]
        %v249 = vld [vmem:[#allocation8 + $0x10] sm:$0xff]
        %v250 = vld [vmem:[#allocation8 + $0x18] sm:$0xff]
        %v251 = vld [vmem:[%s231] sm:$0x1]
        %v253 = vlaneseq
        %v254 = vshrl.u32 %v253, 7
        %v255 = vsub.s32 0, %v254
        %v256 = vrot.slane %v251, %v255
        %vm258 = vcmask 261120
        %v260 = vsel %vm258, %v245, 0
        %v263 = vsel %vm258, %v246, 0
        %265 = vmatprep.subr.mxu0 0.0
        %266 = vmatpush1.msra.mxu0 %v247
        %267 = vmatprep.subr.mxu0 0.0
        %268 = vmatpush1.msra.mxu0 %v248
        %269 = vmatprep.subr.mxu0 0.0
        %270 = vmatpush1.msra.mxu0 %v249
        %271 = vmatprep.subr.mxu0 0.0
        %272 = vmatpush1.msra.mxu0 %v250
        %273 = vmatprep.subr.mxu0 0.0
        %274 = vmatpush1.msra.mxu0 0.0
        %275 = vmatprep.subr.mxu0 0.0
        %276 = vmatpush1.msra.mxu0 0.0
        %277 = vmatprep.subr.mxu0 0.0
        %278 = vmatpush1.msra.mxu0 0.0
        %279 = vmatprep.subr.mxu0 0.0
        %280 = vmatpush1.msra.mxu0 0.0
        %281 = vmatprep.subr.mxu0 0.0
        %282 = vmatpush1.msra.mxu0 0.0
        %283 = vmatprep.subr.mxu0 0.0
        %284 = vmatpush1.msra.mxu0 0.0
        %285 = vmatprep.subr.mxu0 0.0
        %286 = vmatpush1.msra.mxu0 0.0
        %287 = vmatprep.subr.mxu0 0.0
        %288 = vmatpush1.msra.mxu0 0.0
        %289 = vmatprep.subr.mxu0 0.0
        %290 = vmatpush1.msra.mxu0 0.0
        %291 = vmatprep.subr.mxu0 0.0
        %292 = vmatpush1.msra.mxu0 0.0
        %293 = vmatprep.subr.mxu0 0.0
        %294 = vmatpush1.msra.mxu0 0.0
        %295 = vmatprep.subr.mxu0 0.0
        %296 = vmatpush1.msra.mxu0 0.0
        %297 = vmatprep.subr.mxu0 0.0
        %298 = vmatpush1.msra.mxu0 0.0
        %299 = vmatprep.subr.mxu0 0.0
        %300 = vmatpush1.msra.mxu0 0.0
        %301 = vmatprep.subr.mxu0 0.0
        %302 = vmatpush1.msra.mxu0 0.0
        %303 = vmatprep.subr.mxu0 0.0
        %304 = vmatpush1.msra.mxu0 0.0
        %305 = vmatprep.subr.mxu0 0.0
        %306 = vmatpush1.msra.mxu0 0.0
        %307 = vmatprep.subr.mxu0 0.0
        %308 = vmatpush1.msra.mxu0 0.0
        %309 = vmatprep.subr.mxu0 0.0
        %310 = vmatpush1.msra.mxu0 0.0
        %311 = vmatprep.subr.mxu0 0.0
        %312 = vmatpush1.msra.mxu0 0.0
        %313 = vmatprep.subr.mxu0 0.0
        %314 = vmatpush1.msra.mxu0 0.0
        %315 = vmatprep.subr.mxu0 0.0
        %316 = vmatpush1.msra.mxu0 0.0
        %317 = vmatprep.subr.mxu0 0.0
        %318 = vmatpush1.msra.mxu0 0.0
        %319 = vmatprep.subr.mxu0 0.0
        %320 = vmatpush1.msra.mxu0 0.0
        %321 = vmatprep.subr.mxu0 0.0
        %322 = vmatpush1.msra.mxu0 0.0
        %323 = vmatprep.subr.mxu0 0.0
        %324 = vmatpush1.msra.mxu0 0.0
        %325 = vmatprep.subr.mxu0 0.0
        %326 = vmatpush1.msra.mxu0 0.0
        %327 = vmatprep.subr.mxu0 0.0
        %328 = vmatpush1.msra.mxu0 0.0
        %329 = vmatprep.mubr.f32.mxu0 0.0
        %330 = vmatmul.mubr.f32.gmra.mrb[0].mxu0 %v260
        %v331 = vpop.f32.mrb[0].mxu0
        %v332 = vadd.f32 %v256, %v331
        %v333 = vpop.f32.mrb[0].mxu0
        %334 = vmatprep.mubr.f32.mxu0 0.0
        %335 = vmatmul.mubr.f32.gmra.mrb[0].mxu0 %v263
        %v336 = vpop.f32.mrb[0].mxu0
        %v337 = vadd.f32 %v256, %v336
        %v338 = vpop.f32.mrb[0].mxu0
        %339 = vdwg.mxu0
        %s340 = smul.u32 %s26, 128
        %v341 = vlaneseq
        %v342 = vand.u32 %v341, 127
        %v343 = vstv %s340
        %v344 = vadd.s32 %v343, %v342
        %vm345 = vcmp.lt.s32.totalorder %v344, 64
        %v346 = vsel %vm345, %v332, -1e+30
        %v347 = vsel %vm345, %v337, -1e+30
        // Predicated region
        $region45: #{tpu_custom_call.1} parent=31 // pred_check
          %p348 = pneg %p234
        $region46: #{tpu_custom_call.1} parent=31 // pred_check_branch
          %350 = sbr.rel (%p348) target = $region48
        $region47: #{tpu_custom_call.1} parent=31 // pred_region
          %v351 = vld [vmem:[#allocation2] sm:$0xff]
          %v352 = vld [vmem:[#allocation2 + $0x8] sm:$0xff]
          %353 = vmax.xlane.f32.xlu0 %v346
          %v354 = vpop.xlane.xlu0 %353
          %355 = vmax.xlane.f32.xlu0 %v347
          %v356 = vpop.xlane.xlu0 %355
          %v357 = vmax.f32 %v351, %v354
          %v358 = vmax.f32 %v352, %v356
          %v359 = vld [vmem:[#allocation3] sm:$0xff]
          %v360 = vld [vmem:[#allocation3 + $0x8] sm:$0xff]
          %v361 = vsub.f32 %v351, %v357
          %v362 = vsub.f32 %v352, %v358
          %v363 = vmul.f32 %v361, 1.442695
          %v364 = vpow.pop %v363
          %v365 = vmul.f32 %v362, 1.442695
          %v366 = vpow.pop %v365
          %v367 = vmul.f32 %v359, %v364
          %v368 = vmul.f32 %v360, %v366
          %370 = vset.pattern.permute.xlu0 0
          %371 = vperm.xlu0 %370, %v357
          %v372 = vpop.permute.xlu0 %371
          %375 = vset.pattern.permute.xlu0 0
          %376 = vperm.xlu0 %375, %v358
          %v377 = vpop.permute.xlu0 %376
          %v379 = vsub.f32 %v346, %v372
          %v380 = vsub.f32 %v347, %v377
          %v381 = vmul.f32 %v379, 1.442695
          %v382 = vpow.pop %v381
          %v383 = vmul.f32 %v380, 1.442695
          %v384 = vpow.pop %v383
          %385 = vadd.xlane.f32.xlu0 %v382
          %v386 = vpop.xlane.xlu0 %385
          %387 = vadd.xlane.f32.xlu0 %v384
          %v388 = vpop.xlane.xlu0 %387
          %v389 = vadd.f32 %v367, %v386
          %v390 = vadd.f32 %v368, %v388
          %vm391 = vcmask 7168
          %392 = vst.msk [vmem:[#allocation3] sm:$0xff] %vm391, %v389
          %393 = vst.msk [vmem:[#allocation3 + $0x8] sm:$0xff] %vm391, %v390
          %394 = vst.msk [vmem:[#allocation2] sm:$0xff] %vm391, %v357
          %395 = vst.msk [vmem:[#allocation2 + $0x8] sm:$0xff] %vm391, %v358
          // Predicated region
          $region49: #{tpu_custom_call.1} parent=47 // pred_check
            %p396 = pneg %p235
          $region50: #{tpu_custom_call.1} parent=47 // pred_check_branch
            %398 = sbr.rel (%p396) target = $region52
          $region51: #{tpu_custom_call.1} parent=47 // pred_region
            %v399 = vld [vmem:[#allocation2] sm:$0xff]
            %v400 = vld [vmem:[#allocation2 + $0x8] sm:$0xff]
            %v401 = vld [vmem:[#allocation3] sm:$0xff]
            %v402 = vld [vmem:[#allocation3 + $0x8] sm:$0xff]
            %v403 = vlog2.pop %v401
            %v404 = vmul.f32 %v403, 0.6931472
            %v405 = vlog2.pop %v402
            %v406 = vmul.f32 %v405, 0.6931472
            %v407 = vadd.f32 %v399, %v404
            %v408 = vadd.f32 %v400, %v406
            %409 = vst.msk [vmem:[#allocation4] sm:$0xff] %vm391, %v407
            %410 = vst.msk [vmem:[#allocation4 + $0x8] sm:$0xff] %vm391, %v408
          $region52: #{tpu_custom_call.1} parent=47 // pred_fallthru
            _
        $region48: #{tpu_custom_call.1} parent=31 // pred_fallthru
          _
        %p411 = scmp.eq.s32.totalorder %s25, 1
        // Predicated region
        $region53: #{tpu_custom_call.1} parent=31 // pred_check
          %p412 = pneg %p411
        $region54: #{tpu_custom_call.1} parent=31 // pred_check_branch
          %414 = sbr.rel (%p412) target = $region56
        $region55: #{tpu_custom_call.1} parent=31 // pred_region
          %v415 = vld [vmem:[#allocation4] sm:$0xff]
          %v416 = vld [vmem:[#allocation4 + $0x8] sm:$0xff]
          %418 = vset.pattern.permute.xlu0 0
          %419 = vperm.xlu0 %418, %v415
          %v420 = vpop.permute.xlu0 %419
          %423 = vset.pattern.permute.xlu0 0
          %424 = vperm.xlu0 %423, %v416
          %v425 = vpop.permute.xlu0 %424
          %v427 = vsub.f32 %v346, %v420
          %v428 = vsub.f32 %v347, %v425
          %429 = vst [vmem:[%s227] sm:$0xff] %v427
          %430 = vst [vmem:[%s227 + $0x8] sm:$0xff] %v428
        $region56: #{tpu_custom_call.1} parent=31 // pred_fallthru
          _
        %s431 = sand.u32 %s128, 1
        %s432 = scalar_lea.sflag [#allocation7], %s431
        %s433 = sand.u32 %s128, 1
        %s434 = smul.addr %s433, 16
        %s435 = scalar_lea.vmem [#allocation10], %s434
        // Predicated region
        $region57: #{tpu_custom_call.1} parent=31 // pred_check
          %p436 = pneg %p138
        $region58: #{tpu_custom_call.1} parent=31 // pred_check_branch
          %438 = sbr.rel (%p436) target = $region60
        $region59: #{tpu_custom_call.1} parent=31 // pred_region
          %s439 = smul.u32 %s26, %s25
          %s440 = smul.u32 2, %s24
          %s442 = ssub.s32 256, 256
          %443 = vsyncadd %s432, %s442
          %s444 = sadd.s32 %s439, %s440
          %s445 = smul.addr %s444, 128
          %s446 = scalar_lea.hbm %s3, %s445
          %s447 = sshll.u32 %s435, 4
          %s448 = int_to_ptr.vmem [resolvable:$true] %s447
          %453 = dma.vmem_to_hbm [thread:$0]  %s448, 256, %s446, %s432, 128, 128, 8
        $region60: #{tpu_custom_call.1} parent=31 // pred_fallthru
          _
      $region32: #{tpu_custom_call.1} parent=5 // pred_fallthru
        _
      %p454 = scmp.le.s32.totalorder 2, %s14
      // Predicated region
      $region61: #{tpu_custom_call.1} parent=5 // pred_check
        %p455 = pneg %p454
      $region62: #{tpu_custom_call.1} parent=5 // pred_check_branch
        %457 = sbr.rel (%p455) target = $region64
      $region63: #{tpu_custom_call.1} parent=5 // pred_region
        %s458 = ssub.s32 %s14, 2
        // Predicated region
        $region65: #{tpu_custom_call.1} parent=63 // pred_check
          %p459 = pneg %p144
        $region66: #{tpu_custom_call.1} parent=63 // pred_check_branch
          %461 = sbr.rel (%p459) target = $region68
        $region67: #{tpu_custom_call.1} parent=63 // pred_region
          %s462 = sand.u32 %s129, 1
          %s463 = scalar_lea.sflag [#allocation7], %s462
          %s464 = sand.u32 %s129, 1
          %s465 = smul.addr %s464, 16
          %s466 = scalar_lea.vmem [#allocation10], %s465
          %467 = dma.done %s463, 256
        $region68: #{tpu_custom_call.1} parent=63 // pred_fallthru
          _
      $region64: #{tpu_custom_call.1} parent=5 // pred_fallthru
        _
    $region6: #{tpu_custom_call.1} parent=1 // loop_footer
      %s18 = sadd.s32 1, %s14
    $region7: #{tpu_custom_call.1} parent=1 // loop_footer_branch
      %13 = sbr.rel target = $region3
    $region8: #{tpu_custom_call.1} parent=1 // loop_exit
      _
    %468 = vsyncpa [#allocation6], 1
    %s469 = scalar_lea.sflag [#allocation6], 1
    %470 = vsyncpa %s469, 1
    %471 = vsyncpa [#allocation9], 1
    %472 = vsyncpa [#allocation7], 1
    %s473 = scalar_lea.sflag [#allocation7], 1
    %474 = vsyncpa %s473, 1

</llo_original>
